<compile_context>
chip_gen: v7x
topology: tpu7x:2x2x1
jax: 0.10.0
libtpu: 0.0.40
codegen_flags: <defaults>
</compile_context>

<pallas_src>
import functools

import jax
import jax.numpy as jnp
from jax.experimental import pallas as pl
from jax.experimental.pallas import tpu as pltpu

_LANE = 128  # lane width (last-dim alignment for weights / output)

_BUFFERED = getattr(pl, "Buffered", None)


def _round_up(n, m):
    return ((n + m - 1) // m) * m


def _vmem_capacity_bytes():
    try:
        return int(pltpu.get_tpu_info().vmem_capacity_bytes)
    except Exception:
        return 64 * 1024 * 1024  # conservative (v7x-sized) fallback


def _pad_cast(a, rows, cols, dtype):
    """Zero-pad `a` to (rows, cols) and cast; no-op if already that shape/dtype."""
    if a.ndim == 1:
        a = a.reshape((1, -1))
    if a.shape == (rows, cols) and a.dtype == jnp.dtype(dtype):
        return a
    out = jnp.zeros((rows, cols), dtype)
    return out.at[: a.shape[0], : a.shape[1]].set(a.astype(dtype))


def _mlp_kernel(x_ref, w1_ref, b1_ref, w2_ref, b2_ref, w3_ref, b3_ref, o_ref,
                *, compute_dtype):
    # Layer 1: cast x on-chip to the MXU operand dtype, accumulate in f32.
    x = x_ref[...].astype(compute_dtype)
    h = jnp.dot(x, w1_ref[...], preferred_element_type=jnp.float32)
    h = jnp.maximum(h + b1_ref[...], 0.0)

    # Layer 2.
    h = jnp.dot(h.astype(compute_dtype), w2_ref[...],
                preferred_element_type=jnp.float32)
    h = jnp.maximum(h + b2_ref[...], 0.0)

    # Layer 3: final linear, no activation.
    out = jnp.dot(h.astype(compute_dtype), w3_ref[...],
                  preferred_element_type=jnp.float32)
    out = out + b3_ref[...]

    o_ref[...] = out.astype(o_ref.dtype)


def neural_net_forward(x, w1, b1, w2, b2, w3, b3, *,
                       batch_tile=512, compute_dtype=jnp.bfloat16):
    """Fused 3-layer MLP forward. Returns (B, output_size) in x.dtype."""
    B, in_size = x.shape
    hidden_size = w1.shape[1]
    output_size = w3.shape[1]

    c_dtype = jnp.dtype(compute_dtype)
    out_dtype = x.dtype

    # Pad only the lane (N) dims of weights/biases so matmuls and the output
    # store are lane-dense; x and the K dim of layer 1 stay unpadded.
    hid_p = _round_up(hidden_size, _LANE)
    out_p = _round_up(output_size, _LANE)

    # Batch tile: >= 16 rows (bf16 sublane packing); small batches collapse to
    # a single grid step so tiny problems pay no per-step pipeline overhead.
    tb = max(16, min(_round_up(batch_tile, 16), _round_up(B, 16)))

    # Generation-aware VMEM budget (leave ~20% headroom for compiler scratch).
    vmem_cap = int(0.80 * _vmem_capacity_bytes())

    w_bytes = c_dtype.itemsize * (in_size * hid_p + hid_p * hid_p + hid_p * out_p)
    bias_bytes = 4 * (2 * hid_p + out_p)

    def footprint(tb_):
        io = (2 * tb_ * in_size * x.dtype.itemsize          # double-buffered x
              + 2 * tb_ * out_p * jnp.dtype(out_dtype).itemsize)  # out tiles
        act = 2 * tb_ * hid_p * 4                            # f32 h1/h2 staging
        return 2 * (w_bytes + bias_bytes) + io + act          # 2x weights: worst case

    while tb > 16 and footprint(tb) > vmem_cap:
        tb = max(16, _round_up(tb // 2, 16))
    # TODO(synk): for very large hidden sizes whose resident weights alone exceed
    # the VMEM budget, add a K-tiled grid axis ("arbitrary") with an f32
    # accumulator scratch instead of keeping all three weights resident.

    nb = pl.cdiv(B, tb)

    w1_p = _pad_cast(w1, in_size, hid_p, c_dtype)
    w2_p = _pad_cast(w2, hid_p, hid_p, c_dtype)
    w3_p = _pad_cast(w3, hid_p, out_p, c_dtype)
    b1_p = _pad_cast(b1, 1, hid_p, jnp.float32)
    b2_p = _pad_cast(b2, 1, hid_p, jnp.float32)
    b3_p = _pad_cast(b3, 1, out_p, jnp.float32)

    # Consistent (padded) scheduling hint.
    flops = 2 * B * (in_size * hid_p + hid_p * hid_p + hid_p * out_p)
    bytes_accessed = (x.size * x.dtype.itemsize
                      + (w1_p.size + w2_p.size + w3_p.size) * c_dtype.itemsize
                      + (b1_p.size + b2_p.size + b3_p.size) * 4
                      + B * out_p * jnp.dtype(out_dtype).itemsize)
    cost = pl.CostEstimate(flops=flops, transcendentals=0,
                           bytes_accessed=bytes_accessed)

    vmem_limit = int(min(vmem_cap, max(2 * footprint(tb), 32 * 1024 * 1024)))

    kernel = functools.partial(_mlp_kernel, compute_dtype=c_dtype)
    args = (x, w1_p, b1_p, w2_p, b2_p, w3_p, b3_p)

    def build(single_buffer_weights):
        def resident(shape):
            # Constant block across the grid -> single buffer is enough.
            if single_buffer_weights and _BUFFERED is not None:
                try:
                    return pl.BlockSpec(shape, lambda i: (0, 0),
                                        pipeline_mode=_BUFFERED(1))
                except TypeError:
                    pass
            return pl.BlockSpec(shape, lambda i: (0, 0))

        grid_spec = pltpu.PrefetchScalarGridSpec(
            num_scalar_prefetch=0,
            grid=(nb,),
            in_specs=[
                pl.BlockSpec((tb, in_size), lambda i: (i, 0)),  # x tile (unpadded)
                resident((in_size, hid_p)),                     # w1
                resident((1, hid_p)),                           # b1
                resident((hid_p, hid_p)),                       # w2
                resident((1, hid_p)),                           # b2
                resident((hid_p, out_p)),                       # w3
                resident((1, out_p)),                           # b3
            ],
            out_specs=pl.BlockSpec((tb, out_p), lambda i: (i, 0)),
        )
        return pl.pallas_call(
            kernel,
            out_shape=jax.ShapeDtypeStruct((B, out_p), out_dtype),
            grid_spec=grid_spec,
            compiler_params=pltpu.CompilerParams(
                dimension_semantics=("parallel",),
                vmem_limit_bytes=vmem_limit,
            ),
            cost_estimate=cost,
        )

    # Prefer single-buffered resident weights; fall back to default pipelining
    # if the installed JAX/Mosaic does not accept pipeline_mode=Buffered(1).
    try:
        out_padded = build(True)(*args)
    except Exception:
        out_padded = build(False)(*args)

    return out_padded[:, :output_size] if out_p != output_size else out_padded


def init_params(key, input_size, hidden_size, output_size):
    """Deterministic init mimicking nn.Linear's U(-1/sqrt(fan_in), 1/sqrt(fan_in))."""
    ks = jax.random.split(key, 6)

    def linear_params(kw, kb, fan_in, fan_out):
        bound = 1.0 / jnp.sqrt(jnp.float32(fan_in))
        w = jax.random.uniform(kw, (fan_in, fan_out), jnp.float32, -bound, bound)
        b = jax.random.uniform(kb, (1, fan_out), jnp.float32, -bound, bound)
        return w, b

    w1, b1 = linear_params(ks[0], ks[1], input_size, hidden_size)
    w2, b2 = linear_params(ks[2], ks[3], hidden_size, hidden_size)
    w3, b3 = linear_params(ks[4], ks[5], hidden_size, output_size)
    return w1, b1, w2, b2, w3, b3


def _reference_forward(x, w1, b1, w2, b2, w3, b3, *, compute_dtype):
    """Pure-JAX reference using the same operand-dtype / f32-accum recipe."""
    cd = compute_dtype
    h = jnp.dot(x.astype(cd), w1.astype(cd),
                preferred_element_type=jnp.float32) + b1
    h = jnp.maximum(h, 0.0)
    h = jnp.dot(h.astype(cd), w2.astype(cd),
                preferred_element_type=jnp.float32) + b2
    h = jnp.maximum(h, 0.0)
    return jnp.dot(h.astype(cd), w3.astype(cd),
                   preferred_element_type=jnp.float32) + b3


if __name__ == "__main__":
    # Small synthetic shapes consistent with the bag-of-words chatbot MLP.
    batch = 24
    input_size = 32
    hidden_size = 32
    output_size = 16

    key = jax.random.PRNGKey(0)
    k_x, k_p = jax.random.split(key)

    x = jax.random.normal(k_x, (batch, input_size), jnp.float32)
    params = init_params(k_p, input_size, hidden_size, output_size)
    w1, b1, w2, b2, w3, b3 = params

    # Default path: bf16 MXU operands, single grid step (tb = round_up(24,16) = 32).
    out = jax.block_until_ready(neural_net_forward(x, *params))
    # Multi-step pipelined path with a partial (masked) last batch tile.
    out_tiled = jax.block_until_ready(
        neural_net_forward(x, *params, batch_tile=16))
    # Full-f32 compute path (parity with the f32 PyTorch module).
    out_f32 = jax.block_until_ready(
        neural_net_forward(x, *params, compute_dtype=jnp.float32))

    ref_bf16 = _reference_forward(x, *params, compute_dtype=jnp.bfloat16)
    ref_f32 = jnp.maximum(jnp.maximum(x @ w1 + b1, 0.0) @ w2 + b2, 0.0) @ w3 + b3

    assert out.shape == (batch, output_size)
    assert out.dtype == x.dtype
    assert jnp.allclose(out, ref_bf16, atol=2e-2, rtol=2e-2)        # vs bf16 recipe
    assert jnp.allclose(out, ref_f32, atol=1e-1, rtol=1e-1)         # vs f32 math
    assert jnp.allclose(out_tiled, out, atol=1e-5, rtol=1e-5)       # tiling-invariant
    assert jnp.allclose(out_f32, ref_f32, atol=2e-2, rtol=2e-2)     # f32 compute path

    print("KERNEL_OK")
</pallas_src>

<mosaic_0001>
module attributes {stable_mosaic.version = 11 : i64} {
  func.func @_mlp_kernel(%arg0: i32, %arg1: memref<32x32xf32, #tpu.memory_space<vmem>>, %arg2: memref<32x128xbf16, #tpu.memory_space<vmem>>, %arg3: memref<1x128xf32, #tpu.memory_space<vmem>>, %arg4: memref<128x128xbf16, #tpu.memory_space<vmem>>, %arg5: memref<1x128xf32, #tpu.memory_space<vmem>>, %arg6: memref<128x128xbf16, #tpu.memory_space<vmem>>, %arg7: memref<1x128xf32, #tpu.memory_space<vmem>>, %arg8: memref<32x128xf32, #tpu.memory_space<vmem>>) attributes {dimension_semantics = [#tpu.dimension_semantics<parallel>], iteration_bounds = array<i64: 1>, scalar_prefetch = 0 : i64, scratch_operands = 0 : i64, tpu.core_type = #tpu.core_type<tc>, window_params = [{transform_indices = @transform_0, window_bounds = array<i64: 32, 32>}, {pipeline_mode = #tpu.pipeline_mode<synchronous>, transform_indices = @transform_1, window_bounds = array<i64: 32, 128>}, {pipeline_mode = #tpu.pipeline_mode<synchronous>, transform_indices = @transform_2, window_bounds = array<i64: 1, 128>}, {pipeline_mode = #tpu.pipeline_mode<synchronous>, transform_indices = @transform_3, window_bounds = array<i64: 128, 128>}, {pipeline_mode = #tpu.pipeline_mode<synchronous>, transform_indices = @transform_4, window_bounds = array<i64: 1, 128>}, {pipeline_mode = #tpu.pipeline_mode<synchronous>, transform_indices = @transform_5, window_bounds = array<i64: 128, 128>}, {pipeline_mode = #tpu.pipeline_mode<synchronous>, transform_indices = @transform_6, window_bounds = array<i64: 1, 128>}, {transform_indices = @transform_7, window_bounds = array<i64: 32, 128>}]} {
    %c0 = arith.constant 0 : index
    %c0_0 = arith.constant 0 : index
    %0 = vector.load %arg1[%c0, %c0_0] : memref<32x32xf32, #tpu.memory_space<vmem>>, vector<32x32xf32>
    %1 = arith.truncf %0 : vector<32x32xf32> to vector<32x32xbf16>
    %c0_1 = arith.constant 0 : index
    %c0_2 = arith.constant 0 : index
    %2 = vector.load %arg2[%c0_1, %c0_2] : memref<32x128xbf16, #tpu.memory_space<vmem>>, vector<32x128xbf16>
    %cst = arith.constant dense<0.000000e+00> : vector<32x128xf32>
    %3 = tpu.matmul %1, %2, %cst {dimension_numbers = #tpu.dot_dimension_numbers<[1], [0], [0], [1], [0, 0, 1, 1], [], []>} : vector<32x32xbf16>, vector<32x128xbf16>, vector<32x128xf32> -> vector<32x128xf32>
    %c0_3 = arith.constant 0 : index
    %c0_4 = arith.constant 0 : index
    %4 = vector.load %arg3[%c0_3, %c0_4] : memref<1x128xf32, #tpu.memory_space<vmem>>, vector<1x128xf32>
    %5 = vector.broadcast %4 : vector<1x128xf32> to vector<32x128xf32>
    %6 = arith.addf %3, %5 : vector<32x128xf32>
    %cst_5 = arith.constant 0.000000e+00 : f32
    %7 = vector.broadcast %cst_5 : f32 to vector<32x128xf32>
    %8 = arith.maximumf %6, %7 : vector<32x128xf32>
    %9 = arith.truncf %8 : vector<32x128xf32> to vector<32x128xbf16>
    %c0_6 = arith.constant 0 : index
    %c0_7 = arith.constant 0 : index
    %10 = vector.load %arg4[%c0_6, %c0_7] : memref<128x128xbf16, #tpu.memory_space<vmem>>, vector<128x128xbf16>
    %cst_8 = arith.constant dense<0.000000e+00> : vector<32x128xf32>
    %11 = tpu.matmul %9, %10, %cst_8 {dimension_numbers = #tpu.dot_dimension_numbers<[1], [0], [0], [1], [0, 0, 1, 1], [], []>} : vector<32x128xbf16>, vector<128x128xbf16>, vector<32x128xf32> -> vector<32x128xf32>
    %c0_9 = arith.constant 0 : index
    %c0_10 = arith.constant 0 : index
    %12 = vector.load %arg5[%c0_9, %c0_10] : memref<1x128xf32, #tpu.memory_space<vmem>>, vector<1x128xf32>
    %13 = vector.broadcast %12 : vector<1x128xf32> to vector<32x128xf32>
    %14 = arith.addf %11, %13 : vector<32x128xf32>
    %cst_11 = arith.constant 0.000000e+00 : f32
    %15 = vector.broadcast %cst_11 : f32 to vector<32x128xf32>
    %16 = arith.maximumf %14, %15 : vector<32x128xf32>
    %17 = arith.truncf %16 : vector<32x128xf32> to vector<32x128xbf16>
    %c0_12 = arith.constant 0 : index
    %c0_13 = arith.constant 0 : index
    %18 = vector.load %arg6[%c0_12, %c0_13] : memref<128x128xbf16, #tpu.memory_space<vmem>>, vector<128x128xbf16>
    %cst_14 = arith.constant dense<0.000000e+00> : vector<32x128xf32>
    %19 = tpu.matmul %17, %18, %cst_14 {dimension_numbers = #tpu.dot_dimension_numbers<[1], [0], [0], [1], [0, 0, 1, 1], [], []>} : vector<32x128xbf16>, vector<128x128xbf16>, vector<32x128xf32> -> vector<32x128xf32>
    %c0_15 = arith.constant 0 : index
    %c0_16 = arith.constant 0 : index
    %20 = vector.load %arg7[%c0_15, %c0_16] : memref<1x128xf32, #tpu.memory_space<vmem>>, vector<1x128xf32>
    %21 = vector.broadcast %20 : vector<1x128xf32> to vector<32x128xf32>
    %22 = arith.addf %19, %21 : vector<32x128xf32>
    %c0_17 = arith.constant 0 : index
    %c0_18 = arith.constant 0 : index
    %23 = vector.load %arg8[%c0_17, %c0_18] : memref<32x128xf32, #tpu.memory_space<vmem>>, vector<32x128xf32>
    tpu.vector_store %arg8[%c0_17, %c0_18], %22 {strides = array<i32>} : memref<32x128xf32, #tpu.memory_space<vmem>>, vector<32x128xf32>,
    return
  }
  func.func @transform_0(%arg0: i32) -> (i32, i32) {
    %c0_i32 = arith.constant 0 : i32
    %c0_i32_0 = arith.constant 0 : i32
    return %arg0, %c0_i32 : i32, i32
  }
  func.func @transform_1(%arg0: i32) -> (i32, i32) {
    %c0_i32 = arith.constant 0 : i32
    %c0_i32_0 = arith.constant 0 : i32
    %c0_i32_1 = arith.constant 0 : i32
    return %c0_i32, %c0_i32_0 : i32, i32
  }
  func.func @transform_2(%arg0: i32) -> (i32, i32) {
    %c0_i32 = arith.constant 0 : i32
    %c0_i32_0 = arith.constant 0 : i32
    %c0_i32_1 = arith.constant 0 : i32
    return %c0_i32, %c0_i32_0 : i32, i32
  }
  func.func @transform_3(%arg0: i32) -> (i32, i32) {
    %c0_i32 = arith.constant 0 : i32
    %c0_i32_0 = arith.constant 0 : i32
    %c0_i32_1 = arith.constant 0 : i32
    return %c0_i32, %c0_i32_0 : i32, i32
  }
  func.func @transform_4(%arg0: i32) -> (i32, i32) {
    %c0_i32 = arith.constant 0 : i32
    %c0_i32_0 = arith.constant 0 : i32
    %c0_i32_1 = arith.constant 0 : i32
    return %c0_i32, %c0_i32_0 : i32, i32
  }
  func.func @transform_5(%arg0: i32) -> (i32, i32) {
    %c0_i32 = arith.constant 0 : i32
    %c0_i32_0 = arith.constant 0 : i32
    %c0_i32_1 = arith.constant 0 : i32
    return %c0_i32, %c0_i32_0 : i32, i32
  }
  func.func @transform_6(%arg0: i32) -> (i32, i32) {
    %c0_i32 = arith.constant 0 : i32
    %c0_i32_0 = arith.constant 0 : i32
    %c0_i32_1 = arith.constant 0 : i32
    return %c0_i32, %c0_i32_0 : i32, i32
  }
  func.func @transform_7(%arg0: i32) -> (i32, i32) {
    %c0_i32 = arith.constant 0 : i32
    %c0_i32_0 = arith.constant 0 : i32
    return %arg0, %c0_i32 : i32, i32
  }
}

module attributes {stable_mosaic.version = 11 : i64} {
  func.func @_mlp_kernel(%arg0: i32, %arg1: memref<32x32xf32, #tpu.memory_space<vmem>>, %arg2: memref<32x128xbf16, #tpu.memory_space<vmem>>, %arg3: memref<1x128xf32, #tpu.memory_space<vmem>>, %arg4: memref<128x128xbf16, #tpu.memory_space<vmem>>, %arg5: memref<1x128xf32, #tpu.memory_space<vmem>>, %arg6: memref<128x128xbf16, #tpu.memory_space<vmem>>, %arg7: memref<1x128xf32, #tpu.memory_space<vmem>>, %arg8: memref<32x128xf32, #tpu.memory_space<vmem>>) attributes {dimension_semantics = [#tpu.dimension_semantics<parallel>], iteration_bounds = array<i64: 1>, scalar_prefetch = 0 : i64, scratch_operands = 0 : i64, tpu.core_type = #tpu.core_type<tc>, window_params = [{transform_indices = @transform_0, window_bounds = array<i64: 32, 32>}, {pipeline_mode = #tpu.pipeline_mode<synchronous>, transform_indices = @transform_1, window_bounds = array<i64: 32, 128>}, {pipeline_mode = #tpu.pipeline_mode<synchronous>, transform_indices = @transform_2, window_bounds = array<i64: 1, 128>}, {pipeline_mode = #tpu.pipeline_mode<synchronous>, transform_indices = @transform_3, window_bounds = array<i64: 128, 128>}, {pipeline_mode = #tpu.pipeline_mode<synchronous>, transform_indices = @transform_4, window_bounds = array<i64: 1, 128>}, {pipeline_mode = #tpu.pipeline_mode<synchronous>, transform_indices = @transform_5, window_bounds = array<i64: 128, 128>}, {pipeline_mode = #tpu.pipeline_mode<synchronous>, transform_indices = @transform_6, window_bounds = array<i64: 1, 128>}, {transform_indices = @transform_7, window_bounds = array<i64: 32, 128>}]} {
    %c0 = arith.constant 0 : index
    %c0_0 = arith.constant 0 : index
    %0 = vector.load %arg1[%c0, %c0_0] : memref<32x32xf32, #tpu.memory_space<vmem>>, vector<32x32xf32>
    %1 = arith.truncf %0 : vector<32x32xf32> to vector<32x32xbf16>
    %c0_1 = arith.constant 0 : index
    %c0_2 = arith.constant 0 : index
    %2 = vector.load %arg2[%c0_1, %c0_2] : memref<32x128xbf16, #tpu.memory_space<vmem>>, vector<32x128xbf16>
    %cst = arith.constant dense<0.000000e+00> : vector<32x128xf32>
    %3 = tpu.matmul %1, %2, %cst {dimension_numbers = #tpu.dot_dimension_numbers<[1], [0], [0], [1], [0, 0, 1, 1], [], []>} : vector<32x32xbf16>, vector<32x128xbf16>, vector<32x128xf32> -> vector<32x128xf32>
    %c0_3 = arith.constant 0 : index
    %c0_4 = arith.constant 0 : index
    %4 = vector.load %arg3[%c0_3, %c0_4] : memref<1x128xf32, #tpu.memory_space<vmem>>, vector<1x128xf32>
    %5 = vector.broadcast %4 : vector<1x128xf32> to vector<32x128xf32>
    %6 = arith.addf %3, %5 : vector<32x128xf32>
    %cst_5 = arith.constant 0.000000e+00 : f32
    %7 = vector.broadcast %cst_5 : f32 to vector<32x128xf32>
    %8 = arith.maximumf %6, %7 : vector<32x128xf32>
    %9 = arith.truncf %8 : vector<32x128xf32> to vector<32x128xbf16>
    %c0_6 = arith.constant 0 : index
    %c0_7 = arith.constant 0 : index
    %10 = vector.load %arg4[%c0_6, %c0_7] : memref<128x128xbf16, #tpu.memory_space<vmem>>, vector<128x128xbf16>
    %cst_8 = arith.constant dense<0.000000e+00> : vector<32x128xf32>
    %11 = tpu.matmul %9, %10, %cst_8 {dimension_numbers = #tpu.dot_dimension_numbers<[1], [0], [0], [1], [0, 0, 1, 1], [], []>} : vector<32x128xbf16>, vector<128x128xbf16>, vector<32x128xf32> -> vector<32x128xf32>
    %c0_9 = arith.constant 0 : index
    %c0_10 = arith.constant 0 : index
    %12 = vector.load %arg5[%c0_9, %c0_10] : memref<1x128xf32, #tpu.memory_space<vmem>>, vector<1x128xf32>
    %13 = vector.broadcast %12 : vector<1x128xf32> to vector<32x128xf32>
    %14 = arith.addf %11, %13 : vector<32x128xf32>
    %cst_11 = arith.constant 0.000000e+00 : f32
    %15 = vector.broadcast %cst_11 : f32 to vector<32x128xf32>
    %16 = arith.maximumf %14, %15 : vector<32x128xf32>
    %17 = arith.truncf %16 : vector<32x128xf32> to vector<32x128xbf16>
    %c0_12 = arith.constant 0 : index
    %c0_13 = arith.constant 0 : index
    %18 = vector.load %arg6[%c0_12, %c0_13] : memref<128x128xbf16, #tpu.memory_space<vmem>>, vector<128x128xbf16>
    %cst_14 = arith.constant dense<0.000000e+00> : vector<32x128xf32>
    %19 = tpu.matmul %17, %18, %cst_14 {dimension_numbers = #tpu.dot_dimension_numbers<[1], [0], [0], [1], [0, 0, 1, 1], [], []>} : vector<32x128xbf16>, vector<128x128xbf16>, vector<32x128xf32> -> vector<32x128xf32>
    %c0_15 = arith.constant 0 : index
    %c0_16 = arith.constant 0 : index
    %20 = vector.load %arg7[%c0_15, %c0_16] : memref<1x128xf32, #tpu.memory_space<vmem>>, vector<1x128xf32>
    %21 = vector.broadcast %20 : vector<1x128xf32> to vector<32x128xf32>
    %22 = arith.addf %19, %21 : vector<32x128xf32>
    %c0_17 = arith.constant 0 : index
    %c0_18 = arith.constant 0 : index
    %23 = vector.load %arg8[%c0_17, %c0_18] : memref<32x128xf32, #tpu.memory_space<vmem>>, vector<32x128xf32>
    tpu.vector_store %arg8[%c0_17, %c0_18], %22 {strides = array<i32>} : memref<32x128xf32, #tpu.memory_space<vmem>>, vector<32x128xf32>,
    return
  }
  func.func @transform_0(%arg0: i32) -> (i32, i32) {
    %c0_i32 = arith.constant 0 : i32
    %c0_i32_0 = arith.constant 0 : i32
    return %arg0, %c0_i32 : i32, i32
  }
  func.func @transform_1(%arg0: i32) -> (i32, i32) {
    %c0_i32 = arith.constant 0 : i32
    %c0_i32_0 = arith.constant 0 : i32
    %c0_i32_1 = arith.constant 0 : i32
    return %c0_i32, %c0_i32_0 : i32, i32
  }
  func.func @transform_2(%arg0: i32) -> (i32, i32) {
    %c0_i32 = arith.constant 0 : i32
    %c0_i32_0 = arith.constant 0 : i32
    %c0_i32_1 = arith.constant 0 : i32
    return %c0_i32, %c0_i32_0 : i32, i32
  }
  func.func @transform_3(%arg0: i32) -> (i32, i32) {
    %c0_i32 = arith.constant 0 : i32
    %c0_i32_0 = arith.constant 0 : i32
    %c0_i32_1 = arith.constant 0 : i32
    return %c0_i32, %c0_i32_0 : i32, i32
  }
  func.func @transform_4(%arg0: i32) -> (i32, i32) {
    %c0_i32 = arith.constant 0 : i32
    %c0_i32_0 = arith.constant 0 : i32
    %c0_i32_1 = arith.constant 0 : i32
    return %c0_i32, %c0_i32_0 : i32, i32
  }
  func.func @transform_5(%arg0: i32) -> (i32, i32) {
    %c0_i32 = arith.constant 0 : i32
    %c0_i32_0 = arith.constant 0 : i32
    %c0_i32_1 = arith.constant 0 : i32
    return %c0_i32, %c0_i32_0 : i32, i32
  }
  func.func @transform_6(%arg0: i32) -> (i32, i32) {
    %c0_i32 = arith.constant 0 : i32
    %c0_i32_0 = arith.constant 0 : i32
    %c0_i32_1 = arith.constant 0 : i32
    return %c0_i32, %c0_i32_0 : i32, i32
  }
  func.func @transform_7(%arg0: i32) -> (i32, i32) {
    %c0_i32 = arith.constant 0 : i32
    %c0_i32_0 = arith.constant 0 : i32
    return %arg0, %c0_i32 : i32, i32
  }
}

</mosaic_0001>

<llo_original>
// kernel: tpu_custom_call.1
$region0: #{tpu_custom_call.1}
  #allocation0 [shape = 'u32[]', space=smem, size = 0x4, offset = 0x4, fixed_abs, tag = 'smem constant byte address 0x4 - core index']
  #allocation1 [shape = 'u32[144,128]{1,0:T(1,128)}', space=vmem, size = 0x12000, scoped, tag = 'internal scratch']
  %s0 = inlined_call_operand.hbm [shape: f32[24,32], index: 0, kind: input, shape index: {}]
  %s1 = inlined_call_operand.hbm [shape: bf16[32,128], index: 1, kind: input, shape index: {}]
  %s2 = inlined_call_operand.vmem [shape: f32[1,128], index: 2, kind: input, shape index: {}]
  %s3 = inlined_call_operand.hbm [shape: bf16[128,128], index: 3, kind: input, shape index: {}]
  %s4 = inlined_call_operand.vmem [shape: f32[1,128], index: 4, kind: input, shape index: {}]
  %s5 = inlined_call_operand.hbm [shape: bf16[128,128], index: 5, kind: input, shape index: {}]
  %s6 = inlined_call_operand.vmem [shape: f32[1,128], index: 6, kind: input, shape index: {}]
  %s7 = inlined_call_operand.hbm [shape: f32[24,128], index: 7, kind: output, shape index: {}]
  %s8 = sld [smem:[#allocation0]]
  $region54: #{tpu_custom_call.1} parent=0
    _
  %s10 = ssub.s32 1, %s8
  %s11 = scalar_select 0, %s10, %s8
  $region1: #{tpu_custom_call.1} parent=0
    #allocation2 [shape = 'u8[16384]{0}', space=vmem, size = 0x4000, scoped, tag = 'input window, operand 0, single buffered']
    #allocation3 [shape = 's32[1]{0}', space=sflag, size = 0x4, scoped, tag = 'scoped memory for tpu_custom_call.1']
    #allocation4 [shape = 's32[1]{0}', space=sflag, size = 0x4, scoped, tag = 'scoped memory for tpu_custom_call.1']
    #allocation5 [shape = 'u8[8192]{0}', space=vmem, size = 0x2000, scoped, tag = 'input window, operand 1, single buffered']
    #allocation6 [shape = 's32[1]{0}', space=sflag, size = 0x4, scoped, tag = 'scoped memory for tpu_custom_call.1']
    #allocation7 [shape = 'u8[32768]{0}', space=vmem, size = 0x8000, scoped, tag = 'input window, operand 3, single buffered']
    #allocation8 [shape = 'u8[32768]{0}', space=vmem, size = 0x8000, scoped, tag = 'input window, operand 5, single buffered']
    #allocation9 [shape = 's32[1]{0}', space=sflag, size = 0x4, scoped, tag = 'scoped memory for tpu_custom_call.1']
    #allocation10 [shape = 'u8[16384]{0}', space=vmem, size = 0x4000, scoped, tag = 'output window, operand 0, single buffered']
    %12 = vsyncpa [#allocation3], 0
    %13 = vsyncpa [#allocation6], 0
    %14 = vsyncpa [#allocation9], 0
    %15 = vsyncpa [#allocation4], 0
    // Predicated region
    $region2: #{tpu_custom_call.1} parent=1 // pred_check
      _
    $region3: #{tpu_custom_call.1} parent=1 // pred_check_branch
      %17 = sbr.rel (0) target = $region5
    $region4: #{tpu_custom_call.1} parent=1 // pred_region
      %s19 = ssub.s32 512, 384
      %20 = vsyncadd [#allocation3], %s19
      %s21 = sshll.u32 [#allocation2], 4
      %s22 = int_to_ptr.vmem [resolvable:$true] %s21
      %27 = dma.hbm_to_vmem [thread:$0]  %s0, 384, %s22, [#allocation3], 128, 128, 8
    $region5: #{tpu_custom_call.1} parent=1 // pred_fallthru
      _
    // Predicated region
    $region6: #{tpu_custom_call.1} parent=1 // pred_check
      _
    $region7: #{tpu_custom_call.1} parent=1 // pred_check_branch
      %29 = sbr.rel (0) target = $region9
    $region8: #{tpu_custom_call.1} parent=1 // pred_region
      %s31 = ssub.s32 256, 256
      %32 = vsyncadd [#allocation6], %s31
      %s33 = sshll.u32 [#allocation5], 4
      %s34 = int_to_ptr.vmem [resolvable:$true] %s33
      %39 = dma.hbm_to_vmem [thread:$0]  %s1, 256, %s34, [#allocation6], 64, 64, 4
    $region9: #{tpu_custom_call.1} parent=1 // pred_fallthru
      _
    // Predicated region
    $region10: #{tpu_custom_call.1} parent=1 // pred_check
      _
    $region11: #{tpu_custom_call.1} parent=1 // pred_check_branch
      %41 = sbr.rel (0) target = $region13
    $region12: #{tpu_custom_call.1} parent=1 // pred_region
      _
    $region13: #{tpu_custom_call.1} parent=1 // pred_fallthru
      _
    // Predicated region
    $region14: #{tpu_custom_call.1} parent=1 // pred_check
      _
    $region15: #{tpu_custom_call.1} parent=1 // pred_check_branch
      %43 = sbr.rel (0) target = $region17
    $region16: #{tpu_custom_call.1} parent=1 // pred_region
      %s45 = ssub.s32 1024, 1024
      %46 = vsyncadd [#allocation6], %s45
      %s47 = sshll.u32 [#allocation7], 4
      %s48 = int_to_ptr.vmem [resolvable:$true] %s47
      %53 = dma.hbm_to_vmem [thread:$0]  %s3, 1024, %s48, [#allocation6], 64, 64, 4
    $region17: #{tpu_custom_call.1} parent=1 // pred_fallthru
      _
    // Predicated region
    $region18: #{tpu_custom_call.1} parent=1 // pred_check
      _
    $region19: #{tpu_custom_call.1} parent=1 // pred_check_branch
      %55 = sbr.rel (0) target = $region21
    $region20: #{tpu_custom_call.1} parent=1 // pred_region
      _
    $region21: #{tpu_custom_call.1} parent=1 // pred_fallthru
      _
    // Predicated region
    $region22: #{tpu_custom_call.1} parent=1 // pred_check
      _
    $region23: #{tpu_custom_call.1} parent=1 // pred_check_branch
      %57 = sbr.rel (0) target = $region25
    $region24: #{tpu_custom_call.1} parent=1 // pred_region
      %s59 = ssub.s32 1024, 1024
      %60 = vsyncadd [#allocation9], %s59
      %s61 = sshll.u32 [#allocation8], 4
      %s62 = int_to_ptr.vmem [resolvable:$true] %s61
      %67 = dma.hbm_to_vmem [thread:$0]  %s5, 1024, %s62, [#allocation9], 64, 64, 4
    $region25: #{tpu_custom_call.1} parent=1 // pred_fallthru
      _
    // Predicated region
    $region26: #{tpu_custom_call.1} parent=1 // pred_check
      _
    $region27: #{tpu_custom_call.1} parent=1 // pred_check_branch
      %69 = sbr.rel (0) target = $region29
    $region28: #{tpu_custom_call.1} parent=1 // pred_region
      _
    $region29: #{tpu_custom_call.1} parent=1 // pred_fallthru
      _
    // Predicated region
    $region30: #{tpu_custom_call.1} parent=1 // pred_check
      _
    $region31: #{tpu_custom_call.1} parent=1 // pred_check_branch
      %71 = sbr.rel (0) target = $region33
    $region32: #{tpu_custom_call.1} parent=1 // pred_region
      %72 = dma.done [#allocation3], 512
    $region33: #{tpu_custom_call.1} parent=1 // pred_fallthru
      _
    // Predicated region
    $region34: #{tpu_custom_call.1} parent=1 // pred_check
      _
    $region35: #{tpu_custom_call.1} parent=1 // pred_check_branch
      %74 = sbr.rel (0) target = $region37
    $region36: #{tpu_custom_call.1} parent=1 // pred_region
      %75 = dma.done [#allocation6], 256
    $region37: #{tpu_custom_call.1} parent=1 // pred_fallthru
      _
    // Predicated region
    $region38: #{tpu_custom_call.1} parent=1 // pred_check
      _
    $region39: #{tpu_custom_call.1} parent=1 // pred_check_branch
      %77 = sbr.rel (0) target = $region41
    $region40: #{tpu_custom_call.1} parent=1 // pred_region
      %78 = dma.done [#allocation6], 1024
    $region41: #{tpu_custom_call.1} parent=1 // pred_fallthru
      _
    // Predicated region
    $region42: #{tpu_custom_call.1} parent=1 // pred_check
      _
    $region43: #{tpu_custom_call.1} parent=1 // pred_check_branch
      %80 = sbr.rel (0) target = $region45
    $region44: #{tpu_custom_call.1} parent=1 // pred_region
      %81 = dma.done [#allocation9], 1024
    $region45: #{tpu_custom_call.1} parent=1 // pred_fallthru
      _
    %v83 = vld [vmem:[#allocation2] sm:$0xff]
    %v84 = vld [vmem:[#allocation2 + $0x8] sm:$0xff]
    %v85 = vld [vmem:[#allocation2 + $0x10] sm:$0xff]
    %v86 = vld [vmem:[#allocation2 + $0x18] sm:$0xff]
    %v87 = vpack.c.bf16 %v84, %v83
    %v88 = vpack.c.bf16 %v86, %v85
    %v89 = vld [vmem:[#allocation5] sm:$0xf]
    %v90 = vld [vmem:[#allocation5 + $0x4] sm:$0xf]
    %v91 = vld [vmem:[#allocation5 + $0x8] sm:$0xf]
    %v92 = vld [vmem:[#allocation5 + $0xc] sm:$0xf]
    %v93 = vld [vmem:[%s2] sm:$0x1]
    %v95 = vlaneseq
    %v96 = vshrl.u32 %v95, 7
    %v97 = vsub.s32 0, %v96
    %v98 = vrot.slane %v93, %v97
    %v104 = vunpack.c.l.b16 %v89
    %v105 = vunpack.c.l.b16 %v90
    %v106 = vunpack.c.l.b16 %v91
    %v107 = vunpack.c.l.b16 %v92
    %v108 = vpack.c.b16 %v105, %v104
    %v109 = vpack.c.b16 %v107, %v106
    %vm112 = vcmask 261120
    %v114 = vsel %vm112, %v87, 0
    %v117 = vsel %vm112, %v88, 0
    %119 = vmatprep.subr.bf16.mxu0 0
    %120 = vmatpush1.bf16.msra.mxu0 %v108
    %121 = vmatprep.subr.bf16.mxu0 0
    %122 = vmatpush1.bf16.msra.mxu0 %v109
    %123 = vmatprep.subr.bf16.mxu0 0
    %124 = vmatpush1.bf16.msra.mxu0 0
    %125 = vmatprep.subr.bf16.mxu0 0
    %126 = vmatpush1.bf16.msra.mxu0 0
    %127 = vmatprep.subr.bf16.mxu0 0
    %128 = vmatpush1.bf16.msra.mxu0 0
    %129 = vmatprep.subr.bf16.mxu0 0
    %130 = vmatpush1.bf16.msra.mxu0 0
    %131 = vmatprep.subr.bf16.mxu0 0
    %132 = vmatpush1.bf16.msra.mxu0 0
    %133 = vmatprep.subr.bf16.mxu0 0
    %134 = vmatpush1.bf16.msra.mxu0 0
    %135 = vmatprep.subr.bf16.mxu0 0
    %136 = vmatpush1.bf16.msra.mxu0 0
    %137 = vmatprep.subr.bf16.mxu0 0
    %138 = vmatpush1.bf16.msra.mxu0 0
    %139 = vmatprep.subr.bf16.mxu0 0
    %140 = vmatpush1.bf16.msra.mxu0 0
    %141 = vmatprep.subr.bf16.mxu0 0
    %142 = vmatpush1.bf16.msra.mxu0 0
    %143 = vmatprep.subr.bf16.mxu0 0
    %144 = vmatpush1.bf16.msra.mxu0 0
    %145 = vmatprep.subr.bf16.mxu0 0
    %146 = vmatpush1.bf16.msra.mxu0 0
    %147 = vmatprep.subr.bf16.mxu0 0
    %148 = vmatpush1.bf16.msra.mxu0 0
    %149 = vmatprep.subr.bf16.mxu0 0
    %150 = vmatpush1.bf16.msra.mxu0 0
    %151 = vmatprep.mubr.bf16.mxu0 0
    %152 = vmatmul.mubr.bf16.gmra.mrb[0].mxu0 %v114
    %v153 = vpop.f32.mrb[0].mxu0
    %v154 = vadd.f32 %v98, %v153
    %v155 = vpop.f32.mrb[0].mxu0
    %v156 = vpop.f32.mrb[0].mxu0
    %v157 = vadd.f32 %v98, %v156
    %v158 = vpop.f32.mrb[0].mxu0
    %159 = vmatprep.mubr.bf16.mxu0 0
    %160 = vmatmul.mubr.bf16.gmra.mrb[0].mxu0 %v117
    %v161 = vpop.f32.mrb[0].mxu0
    %v162 = vadd.f32 %v98, %v161
    %v163 = vpop.f32.mrb[0].mxu0
    %v164 = vpop.f32.mrb[0].mxu0
    %v165 = vadd.f32 %v98, %v164
    %v166 = vpop.f32.mrb[0].mxu0
    %167 = vdwg.mxu0
    %v168 = vmax.f32 %v154, 0.0
    %v169 = vmax.f32 %v157, 0.0
    %v170 = vmax.f32 %v162, 0.0
    %v171 = vmax.f32 %v165, 0.0
    %v172 = vpack.c.bf16 %v169, %v168
    %v173 = vpack.c.bf16 %v171, %v170
    %v174 = vld [vmem:[#allocation7] sm:$0xf]
    %v175 = vld [vmem:[#allocation7 + $0x4] sm:$0xf]
    %v176 = vld [vmem:[#allocation7 + $0x8] sm:$0xf]
    %v177 = vld [vmem:[#allocation7 + $0xc] sm:$0xf]
    %v178 = vld [vmem:[#allocation7 + $0x10] sm:$0xf]
    %v179 = vld [vmem:[#allocation7 + $0x14] sm:$0xf]
    %v180 = vld [vmem:[#allocation7 + $0x18] sm:$0xf]
    %v181 = vld [vmem:[#allocation7 + $0x1c] sm:$0xf]
    %v182 = vld [vmem:[#allocation7 + $0x20] sm:$0xf]
    %v183 = vld [vmem:[#allocation7 + $0x24] sm:$0xf]
    %v184 = vld [vmem:[#allocation7 + $0x28] sm:$0xf]
    %v185 = vld [vmem:[#allocation7 + $0x2c] sm:$0xf]
    %v186 = vld [vmem:[#allocation7 + $0x30] sm:$0xf]
    %v187 = vld [vmem:[#allocation7 + $0x34] sm:$0xf]
    %v188 = vld [vmem:[#allocation7 + $0x38] sm:$0xf]
    %v189 = vld [vmem:[#allocation7 + $0x3c] sm:$0xf]
    %v190 = vld [vmem:[%s4] sm:$0x1]
    %v192 = vlaneseq
    %v193 = vshrl.u32 %v192, 7
    %v194 = vsub.s32 0, %v193
    %v195 = vrot.slane %v190, %v194
    %v213 = vunpack.c.l.b16 %v174
    %v214 = vunpack.c.l.b16 %v175
    %v215 = vunpack.c.l.b16 %v176
    %v216 = vunpack.c.l.b16 %v177
    %v217 = vunpack.c.l.b16 %v178
    %v218 = vunpack.c.l.b16 %v179
    %v219 = vunpack.c.l.b16 %v180
    %v220 = vunpack.c.l.b16 %v181
    %v221 = vunpack.c.l.b16 %v182
    %v222 = vunpack.c.l.b16 %v183
    %v223 = vunpack.c.l.b16 %v184
    %v224 = vunpack.c.l.b16 %v185
    %v225 = vunpack.c.l.b16 %v186
    %v226 = vunpack.c.l.b16 %v187
    %v227 = vunpack.c.l.b16 %v188
    %v228 = vunpack.c.l.b16 %v189
    %v229 = vpack.c.b16 %v214, %v213
    %v230 = vpack.c.b16 %v216, %v215
    %v231 = vpack.c.b16 %v218, %v217
    %v232 = vpack.c.b16 %v220, %v219
    %v233 = vpack.c.b16 %v222, %v221
    %v234 = vpack.c.b16 %v224, %v223
    %v235 = vpack.c.b16 %v226, %v225
    %v236 = vpack.c.b16 %v228, %v227
    %245 = vmatprep.subr.bf16.mxu0 0
    %246 = vmatpush1.bf16.msra.mxu0 %v229
    %247 = vmatprep.subr.bf16.mxu0 0
    %248 = vmatpush1.bf16.msra.mxu0 %v230
    %249 = vmatprep.subr.bf16.mxu0 0
    %250 = vmatpush1.bf16.msra.mxu0 %v231
    %251 = vmatprep.subr.bf16.mxu0 0
    %252 = vmatpush1.bf16.msra.mxu0 %v232
    %253 = vmatprep.subr.bf16.mxu0 0
    %254 = vmatpush1.bf16.msra.mxu0 %v233
    %255 = vmatprep.subr.bf16.mxu0 0
    %256 = vmatpush1.bf16.msra.mxu0 %v234
    %257 = vmatprep.subr.bf16.mxu0 0
    %258 = vmatpush1.bf16.msra.mxu0 %v235
    %259 = vmatprep.subr.bf16.mxu0 0
    %260 = vmatpush1.bf16.msra.mxu0 %v236
    %261 = vmatprep.subr.bf16.mxu0 0
    %262 = vmatpush1.bf16.msra.mxu0 0
    %263 = vmatprep.subr.bf16.mxu0 0
    %264 = vmatpush1.bf16.msra.mxu0 0
    %265 = vmatprep.subr.bf16.mxu0 0
    %266 = vmatpush1.bf16.msra.mxu0 0
    %267 = vmatprep.subr.bf16.mxu0 0
    %268 = vmatpush1.bf16.msra.mxu0 0
    %269 = vmatprep.subr.bf16.mxu0 0
    %270 = vmatpush1.bf16.msra.mxu0 0
    %271 = vmatprep.subr.bf16.mxu0 0
    %272 = vmatpush1.bf16.msra.mxu0 0
    %273 = vmatprep.subr.bf16.mxu0 0
    %274 = vmatpush1.bf16.msra.mxu0 0
    %275 = vmatprep.subr.bf16.mxu0 0
    %276 = vmatpush1.bf16.msra.mxu0 0
    %277 = vmatprep.mubr.bf16.mxu0 0
    %278 = vmatmul.mubr.bf16.gmra.mrb[0].mxu0 %v172
    %v279 = vpop.f32.mrb[0].mxu0
    %v280 = vadd.f32 %v195, %v279
    %v281 = vpop.f32.mrb[0].mxu0
    %v282 = vpop.f32.mrb[0].mxu0
    %v283 = vadd.f32 %v195, %v282
    %v284 = vpop.f32.mrb[0].mxu0
    %285 = vmatprep.mubr.bf16.mxu0 0
    %286 = vmatmul.mubr.bf16.gmra.mrb[0].mxu0 %v173
    %v287 = vpop.f32.mrb[0].mxu0
    %v288 = vadd.f32 %v195, %v287
    %v289 = vpop.f32.mrb[0].mxu0
    %v290 = vpop.f32.mrb[0].mxu0
    %v291 = vadd.f32 %v195, %v290
    %v292 = vpop.f32.mrb[0].mxu0
    %293 = vdwg.mxu0
    %v294 = vmax.f32 %v280, 0.0
    %v295 = vmax.f32 %v283, 0.0
    %v296 = vmax.f32 %v288, 0.0
    %v297 = vmax.f32 %v291, 0.0
    %v298 = vpack.c.bf16 %v295, %v294
    %v299 = vpack.c.bf16 %v297, %v296
    %v300 = vld [vmem:[#allocation8] sm:$0xf]
    %v301 = vld [vmem:[#allocation8 + $0x4] sm:$0xf]
    %v302 = vld [vmem:[#allocation8 + $0x8] sm:$0xf]
    %v303 = vld [vmem:[#allocation8 + $0xc] sm:$0xf]
    %v304 = vld [vmem:[#allocation8 + $0x10] sm:$0xf]
    %v305 = vld [vmem:[#allocation8 + $0x14] sm:$0xf]
    %v306 = vld [vmem:[#allocation8 + $0x18] sm:$0xf]
    %v307 = vld [vmem:[#allocation8 + $0x1c] sm:$0xf]
    %v308 = vld [vmem:[#allocation8 + $0x20] sm:$0xf]
    %v309 = vld [vmem:[#allocation8 + $0x24] sm:$0xf]
    %v310 = vld [vmem:[#allocation8 + $0x28] sm:$0xf]
    %v311 = vld [vmem:[#allocation8 + $0x2c] sm:$0xf]
    %v312 = vld [vmem:[#allocation8 + $0x30] sm:$0xf]
    %v313 = vld [vmem:[#allocation8 + $0x34] sm:$0xf]
    %v314 = vld [vmem:[#allocation8 + $0x38] sm:$0xf]
    %v315 = vld [vmem:[#allocation8 + $0x3c] sm:$0xf]
    %v316 = vld [vmem:[%s6] sm:$0x1]
    %v318 = vlaneseq
    %v319 = vshrl.u32 %v318, 7
    %v320 = vsub.s32 0, %v319
    %v321 = vrot.slane %v316, %v320
    %v339 = vunpack.c.l.b16 %v300
    %v340 = vunpack.c.l.b16 %v301
    %v341 = vunpack.c.l.b16 %v302
    %v342 = vunpack.c.l.b16 %v303
    %v343 = vunpack.c.l.b16 %v304
    %v344 = vunpack.c.l.b16 %v305
    %v345 = vunpack.c.l.b16 %v306
    %v346 = vunpack.c.l.b16 %v307
    %v347 = vunpack.c.l.b16 %v308
    %v348 = vunpack.c.l.b16 %v309
    %v349 = vunpack.c.l.b16 %v310
    %v350 = vunpack.c.l.b16 %v311
    %v351 = vunpack.c.l.b16 %v312
    %v352 = vunpack.c.l.b16 %v313
    %v353 = vunpack.c.l.b16 %v314
    %v354 = vunpack.c.l.b16 %v315
    %v355 = vpack.c.b16 %v340, %v339
    %v356 = vpack.c.b16 %v342, %v341
    %v357 = vpack.c.b16 %v344, %v343
    %v358 = vpack.c.b16 %v346, %v345
    %v359 = vpack.c.b16 %v348, %v347
    %v360 = vpack.c.b16 %v350, %v349
    %v361 = vpack.c.b16 %v352, %v351
    %v362 = vpack.c.b16 %v354, %v353
    %371 = vmatprep.subr.bf16.mxu0 0
    %372 = vmatpush1.bf16.msra.mxu0 %v355
    %373 = vmatprep.subr.bf16.mxu0 0
    %374 = vmatpush1.bf16.msra.mxu0 %v356
    %375 = vmatprep.subr.bf16.mxu0 0
    %376 = vmatpush1.bf16.msra.mxu0 %v357
    %377 = vmatprep.subr.bf16.mxu0 0
    %378 = vmatpush1.bf16.msra.mxu0 %v358
    %379 = vmatprep.subr.bf16.mxu0 0
    %380 = vmatpush1.bf16.msra.mxu0 %v359
    %381 = vmatprep.subr.bf16.mxu0 0
    %382 = vmatpush1.bf16.msra.mxu0 %v360
    %383 = vmatprep.subr.bf16.mxu0 0
    %384 = vmatpush1.bf16.msra.mxu0 %v361
    %385 = vmatprep.subr.bf16.mxu0 0
    %386 = vmatpush1.bf16.msra.mxu0 %v362
    %387 = vmatprep.subr.bf16.mxu0 0
    %388 = vmatpush1.bf16.msra.mxu0 0
    %389 = vmatprep.subr.bf16.mxu0 0
    %390 = vmatpush1.bf16.msra.mxu0 0
    %391 = vmatprep.subr.bf16.mxu0 0
    %392 = vmatpush1.bf16.msra.mxu0 0
    %393 = vmatprep.subr.bf16.mxu0 0
    %394 = vmatpush1.bf16.msra.mxu0 0
    %395 = vmatprep.subr.bf16.mxu0 0
    %396 = vmatpush1.bf16.msra.mxu0 0
    %397 = vmatprep.subr.bf16.mxu0 0
    %398 = vmatpush1.bf16.msra.mxu0 0
    %399 = vmatprep.subr.bf16.mxu0 0
    %400 = vmatpush1.bf16.msra.mxu0 0
    %401 = vmatprep.subr.bf16.mxu0 0
    %402 = vmatpush1.bf16.msra.mxu0 0
    %403 = vmatprep.mubr.bf16.mxu0 0
    %404 = vmatmul.mubr.bf16.gmra.mrb[0].mxu0 %v298
    %v405 = vpop.f32.mrb[0].mxu0
    %v406 = vadd.f32 %v321, %v405
    %v407 = vpop.f32.mrb[0].mxu0
    %v408 = vpop.f32.mrb[0].mxu0
    %v409 = vadd.f32 %v321, %v408
    %v410 = vpop.f32.mrb[0].mxu0
    %411 = vmatprep.mubr.bf16.mxu0 0
    %412 = vmatmul.mubr.bf16.gmra.mrb[0].mxu0 %v299
    %v413 = vpop.f32.mrb[0].mxu0
    %v414 = vadd.f32 %v321, %v413
    %v415 = vpop.f32.mrb[0].mxu0
    %v416 = vpop.f32.mrb[0].mxu0
    %v417 = vadd.f32 %v321, %v416
    %v418 = vpop.f32.mrb[0].mxu0
    %419 = vdwg.mxu0
    %420 = vst [vmem:[#allocation10] sm:$0xff] %v406
    %421 = vst [vmem:[#allocation10 + $0x8] sm:$0xff] %v409
    %422 = vst [vmem:[#allocation10 + $0x10] sm:$0xff] %v414
    %423 = vst [vmem:[#allocation10 + $0x18] sm:$0xff] %v417
    // Predicated region
    $region46: #{tpu_custom_call.1} parent=1 // pred_check
      _
    $region47: #{tpu_custom_call.1} parent=1 // pred_check_branch
      %425 = sbr.rel (0) target = $region49
    $region48: #{tpu_custom_call.1} parent=1 // pred_region
      %s427 = ssub.s32 512, 384
      %428 = vsyncadd [#allocation4], %s427
      %s429 = sshll.u32 [#allocation10], 4
      %s430 = int_to_ptr.vmem [resolvable:$true] %s429
      %435 = dma.vmem_to_hbm [thread:$0]  %s430, 384, %s7, [#allocation4], 128, 128, 8
    $region49: #{tpu_custom_call.1} parent=1 // pred_fallthru
      _
    // Predicated region
    $region50: #{tpu_custom_call.1} parent=1 // pred_check
      _
    $region51: #{tpu_custom_call.1} parent=1 // pred_check_branch
      %437 = sbr.rel (0) target = $region53
    $region52: #{tpu_custom_call.1} parent=1 // pred_region
      %438 = dma.done [#allocation4], 512
    $region53: #{tpu_custom_call.1} parent=1 // pred_fallthru
      _
    %439 = vsyncpa [#allocation3], 1
    %440 = vsyncpa [#allocation6], 1
    %441 = vsyncpa [#allocation9], 1
    %442 = vsyncpa [#allocation4], 1

// kernel: tpu_custom_call.1
$region0: #{tpu_custom_call.1}
  #allocation0 [shape = 'u32[]', space=smem, size = 0x4, offset = 0x4, fixed_abs, tag = 'smem constant byte address 0x4 - core index']
  #allocation1 [shape = 'u32[144,128]{1,0:T(1,128)}', space=vmem, size = 0x12000, scoped, tag = 'internal scratch']
  %s0 = inlined_call_operand.hbm [shape: f32[24,32], index: 0, kind: input, shape index: {}]
  %s1 = inlined_call_operand.hbm [shape: bf16[32,128], index: 1, kind: input, shape index: {}]
  %s2 = inlined_call_operand.vmem [shape: f32[1,128], index: 2, kind: input, shape index: {}]
  %s3 = inlined_call_operand.hbm [shape: bf16[128,128], index: 3, kind: input, shape index: {}]
  %s4 = inlined_call_operand.vmem [shape: f32[1,128], index: 4, kind: input, shape index: {}]
  %s5 = inlined_call_operand.hbm [shape: bf16[128,128], index: 5, kind: input, shape index: {}]
  %s6 = inlined_call_operand.vmem [shape: f32[1,128], index: 6, kind: input, shape index: {}]
  %s7 = inlined_call_operand.hbm [shape: f32[24,128], index: 7, kind: output, shape index: {}]
  %s8 = sld [smem:[#allocation0]]
  $region54: #{tpu_custom_call.1} parent=0
    _
  %s10 = ssub.s32 1, %s8
  %s11 = scalar_select 0, %s10, %s8
  $region1: #{tpu_custom_call.1} parent=0
    #allocation2 [shape = 'u8[16384]{0}', space=vmem, size = 0x4000, scoped, tag = 'input window, operand 0, single buffered']
    #allocation3 [shape = 's32[1]{0}', space=sflag, size = 0x4, scoped, tag = 'scoped memory for tpu_custom_call.1']
    #allocation4 [shape = 's32[1]{0}', space=sflag, size = 0x4, scoped, tag = 'scoped memory for tpu_custom_call.1']
    #allocation5 [shape = 'u8[8192]{0}', space=vmem, size = 0x2000, scoped, tag = 'input window, operand 1, single buffered']
    #allocation6 [shape = 's32[1]{0}', space=sflag, size = 0x4, scoped, tag = 'scoped memory for tpu_custom_call.1']
    #allocation7 [shape = 'u8[32768]{0}', space=vmem, size = 0x8000, scoped, tag = 'input window, operand 3, single buffered']
    #allocation8 [shape = 'u8[32768]{0}', space=vmem, size = 0x8000, scoped, tag = 'input window, operand 5, single buffered']
    #allocation9 [shape = 's32[1]{0}', space=sflag, size = 0x4, scoped, tag = 'scoped memory for tpu_custom_call.1']
    #allocation10 [shape = 'u8[16384]{0}', space=vmem, size = 0x4000, scoped, tag = 'output window, operand 0, single buffered']
    %12 = vsyncpa [#allocation3], 0
    %13 = vsyncpa [#allocation6], 0
    %14 = vsyncpa [#allocation9], 0
    %15 = vsyncpa [#allocation4], 0
    // Predicated region
    $region2: #{tpu_custom_call.1} parent=1 // pred_check
      _
    $region3: #{tpu_custom_call.1} parent=1 // pred_check_branch
      %17 = sbr.rel (0) target = $region5
    $region4: #{tpu_custom_call.1} parent=1 // pred_region
      %s19 = ssub.s32 512, 384
      %20 = vsyncadd [#allocation3], %s19
      %s21 = sshll.u32 [#allocation2], 4
      %s22 = int_to_ptr.vmem [resolvable:$true] %s21
      %27 = dma.hbm_to_vmem [thread:$0]  %s0, 384, %s22, [#allocation3], 128, 128, 8
    $region5: #{tpu_custom_call.1} parent=1 // pred_fallthru
      _
    // Predicated region
    $region6: #{tpu_custom_call.1} parent=1 // pred_check
      _
    $region7: #{tpu_custom_call.1} parent=1 // pred_check_branch
      %29 = sbr.rel (0) target = $region9
    $region8: #{tpu_custom_call.1} parent=1 // pred_region
      %s31 = ssub.s32 256, 256
      %32 = vsyncadd [#allocation6], %s31
      %s33 = sshll.u32 [#allocation5], 4
      %s34 = int_to_ptr.vmem [resolvable:$true] %s33
      %39 = dma.hbm_to_vmem [thread:$0]  %s1, 256, %s34, [#allocation6], 64, 64, 4
    $region9: #{tpu_custom_call.1} parent=1 // pred_fallthru
      _
    // Predicated region
    $region10: #{tpu_custom_call.1} parent=1 // pred_check
      _
    $region11: #{tpu_custom_call.1} parent=1 // pred_check_branch
      %41 = sbr.rel (0) target = $region13
    $region12: #{tpu_custom_call.1} parent=1 // pred_region
      _
    $region13: #{tpu_custom_call.1} parent=1 // pred_fallthru
      _
    // Predicated region
    $region14: #{tpu_custom_call.1} parent=1 // pred_check
      _
    $region15: #{tpu_custom_call.1} parent=1 // pred_check_branch
      %43 = sbr.rel (0) target = $region17
    $region16: #{tpu_custom_call.1} parent=1 // pred_region
      %s45 = ssub.s32 1024, 1024
      %46 = vsyncadd [#allocation6], %s45
      %s47 = sshll.u32 [#allocation7], 4
      %s48 = int_to_ptr.vmem [resolvable:$true] %s47
      %53 = dma.hbm_to_vmem [thread:$0]  %s3, 1024, %s48, [#allocation6], 64, 64, 4
    $region17: #{tpu_custom_call.1} parent=1 // pred_fallthru
      _
    // Predicated region
    $region18: #{tpu_custom_call.1} parent=1 // pred_check
      _
    $region19: #{tpu_custom_call.1} parent=1 // pred_check_branch
      %55 = sbr.rel (0) target = $region21
    $region20: #{tpu_custom_call.1} parent=1 // pred_region
      _
    $region21: #{tpu_custom_call.1} parent=1 // pred_fallthru
      _
    // Predicated region
    $region22: #{tpu_custom_call.1} parent=1 // pred_check
      _
    $region23: #{tpu_custom_call.1} parent=1 // pred_check_branch
      %57 = sbr.rel (0) target = $region25
    $region24: #{tpu_custom_call.1} parent=1 // pred_region
      %s59 = ssub.s32 1024, 1024
      %60 = vsyncadd [#allocation9], %s59
      %s61 = sshll.u32 [#allocation8], 4
      %s62 = int_to_ptr.vmem [resolvable:$true] %s61
      %67 = dma.hbm_to_vmem [thread:$0]  %s5, 1024, %s62, [#allocation9], 64, 64, 4
    $region25: #{tpu_custom_call.1} parent=1 // pred_fallthru
      _
    // Predicated region
    $region26: #{tpu_custom_call.1} parent=1 // pred_check
      _
    $region27: #{tpu_custom_call.1} parent=1 // pred_check_branch
      %69 = sbr.rel (0) target = $region29
    $region28: #{tpu_custom_call.1} parent=1 // pred_region
      _
    $region29: #{tpu_custom_call.1} parent=1 // pred_fallthru
      _
    // Predicated region
    $region30: #{tpu_custom_call.1} parent=1 // pred_check
      _
    $region31: #{tpu_custom_call.1} parent=1 // pred_check_branch
      %71 = sbr.rel (0) target = $region33
    $region32: #{tpu_custom_call.1} parent=1 // pred_region
      %72 = dma.done [#allocation3], 512
    $region33: #{tpu_custom_call.1} parent=1 // pred_fallthru
      _
    // Predicated region
    $region34: #{tpu_custom_call.1} parent=1 // pred_check
      _
    $region35: #{tpu_custom_call.1} parent=1 // pred_check_branch
      %74 = sbr.rel (0) target = $region37
    $region36: #{tpu_custom_call.1} parent=1 // pred_region
      %75 = dma.done [#allocation6], 256
    $region37: #{tpu_custom_call.1} parent=1 // pred_fallthru
      _
    // Predicated region
    $region38: #{tpu_custom_call.1} parent=1 // pred_check
      _
    $region39: #{tpu_custom_call.1} parent=1 // pred_check_branch
      %77 = sbr.rel (0) target = $region41
    $region40: #{tpu_custom_call.1} parent=1 // pred_region
      %78 = dma.done [#allocation6], 1024
    $region41: #{tpu_custom_call.1} parent=1 // pred_fallthru
      _
    // Predicated region
    $region42: #{tpu_custom_call.1} parent=1 // pred_check
      _
    $region43: #{tpu_custom_call.1} parent=1 // pred_check_branch
      %80 = sbr.rel (0) target = $region45
    $region44: #{tpu_custom_call.1} parent=1 // pred_region
      %81 = dma.done [#allocation9], 1024
    $region45: #{tpu_custom_call.1} parent=1 // pred_fallthru
      _
    %v83 = vld [vmem:[#allocation2] sm:$0xff]
    %v84 = vld [vmem:[#allocation2 + $0x8] sm:$0xff]
    %v85 = vld [vmem:[#allocation2 + $0x10] sm:$0xff]
    %v86 = vld [vmem:[#allocation2 + $0x18] sm:$0xff]
    %v87 = vpack.c.bf16 %v84, %v83
    %v88 = vpack.c.bf16 %v86, %v85
    %v89 = vld [vmem:[#allocation5] sm:$0xf]
    %v90 = vld [vmem:[#allocation5 + $0x4] sm:$0xf]
    %v91 = vld [vmem:[#allocation5 + $0x8] sm:$0xf]
    %v92 = vld [vmem:[#allocation5 + $0xc] sm:$0xf]
    %v93 = vld [vmem:[%s2] sm:$0x1]
    %v95 = vlaneseq
    %v96 = vshrl.u32 %v95, 7
    %v97 = vsub.s32 0, %v96
    %v98 = vrot.slane %v93, %v97
    %v104 = vunpack.c.l.b16 %v89
    %v105 = vunpack.c.l.b16 %v90
    %v106 = vunpack.c.l.b16 %v91
    %v107 = vunpack.c.l.b16 %v92
    %v108 = vpack.c.b16 %v105, %v104
    %v109 = vpack.c.b16 %v107, %v106
    %vm112 = vcmask 261120
    %v114 = vsel %vm112, %v87, 0
    %v117 = vsel %vm112, %v88, 0
    %119 = vmatprep.subr.bf16.mxu0 0
    %120 = vmatpush1.bf16.msra.mxu0 %v108
    %121 = vmatprep.subr.bf16.mxu0 0
    %122 = vmatpush1.bf16.msra.mxu0 %v109
    %123 = vmatprep.subr.bf16.mxu0 0
    %124 = vmatpush1.bf16.msra.mxu0 0
    %125 = vmatprep.subr.bf16.mxu0 0
    %126 = vmatpush1.bf16.msra.mxu0 0
    %127 = vmatprep.subr.bf16.mxu0 0
    %128 = vmatpush1.bf16.msra.mxu0 0
    %129 = vmatprep.subr.bf16.mxu0 0
    %130 = vmatpush1.bf16.msra.mxu0 0
    %131 = vmatprep.subr.bf16.mxu0 0
    %132 = vmatpush1.bf16.msra.mxu0 0
    %133 = vmatprep.subr.bf16.mxu0 0
    %134 = vmatpush1.bf16.msra.mxu0 0
    %135 = vmatprep.subr.bf16.mxu0 0
    %136 = vmatpush1.bf16.msra.mxu0 0
    %137 = vmatprep.subr.bf16.mxu0 0
    %138 = vmatpush1.bf16.msra.mxu0 0
    %139 = vmatprep.subr.bf16.mxu0 0
    %140 = vmatpush1.bf16.msra.mxu0 0
    %141 = vmatprep.subr.bf16.mxu0 0
    %142 = vmatpush1.bf16.msra.mxu0 0
    %143 = vmatprep.subr.bf16.mxu0 0
    %144 = vmatpush1.bf16.msra.mxu0 0
    %145 = vmatprep.subr.bf16.mxu0 0
    %146 = vmatpush1.bf16.msra.mxu0 0
    %147 = vmatprep.subr.bf16.mxu0 0
    %148 = vmatpush1.bf16.msra.mxu0 0
    %149 = vmatprep.subr.bf16.mxu0 0
    %150 = vmatpush1.bf16.msra.mxu0 0
    %151 = vmatprep.mubr.bf16.mxu0 0
    %152 = vmatmul.mubr.bf16.gmra.mrb[0].mxu0 %v114
    %v153 = vpop.f32.mrb[0].mxu0
    %v154 = vadd.f32 %v98, %v153
    %v155 = vpop.f32.mrb[0].mxu0
    %v156 = vpop.f32.mrb[0].mxu0
    %v157 = vadd.f32 %v98, %v156
    %v158 = vpop.f32.mrb[0].mxu0
    %159 = vmatprep.mubr.bf16.mxu0 0
    %160 = vmatmul.mubr.bf16.gmra.mrb[0].mxu0 %v117
    %v161 = vpop.f32.mrb[0].mxu0
    %v162 = vadd.f32 %v98, %v161
    %v163 = vpop.f32.mrb[0].mxu0
    %v164 = vpop.f32.mrb[0].mxu0
    %v165 = vadd.f32 %v98, %v164
    %v166 = vpop.f32.mrb[0].mxu0
    %167 = vdwg.mxu0
    %v168 = vmax.f32 %v154, 0.0
    %v169 = vmax.f32 %v157, 0.0
    %v170 = vmax.f32 %v162, 0.0
    %v171 = vmax.f32 %v165, 0.0
    %v172 = vpack.c.bf16 %v169, %v168
    %v173 = vpack.c.bf16 %v171, %v170
    %v174 = vld [vmem:[#allocation7] sm:$0xf]
    %v175 = vld [vmem:[#allocation7 + $0x4] sm:$0xf]
    %v176 = vld [vmem:[#allocation7 + $0x8] sm:$0xf]
    %v177 = vld [vmem:[#allocation7 + $0xc] sm:$0xf]
    %v178 = vld [vmem:[#allocation7 + $0x10] sm:$0xf]
    %v179 = vld [vmem:[#allocation7 + $0x14] sm:$0xf]
    %v180 = vld [vmem:[#allocation7 + $0x18] sm:$0xf]
    %v181 = vld [vmem:[#allocation7 + $0x1c] sm:$0xf]
    %v182 = vld [vmem:[#allocation7 + $0x20] sm:$0xf]
    %v183 = vld [vmem:[#allocation7 + $0x24] sm:$0xf]
    %v184 = vld [vmem:[#allocation7 + $0x28] sm:$0xf]
    %v185 = vld [vmem:[#allocation7 + $0x2c] sm:$0xf]
    %v186 = vld [vmem:[#allocation7 + $0x30] sm:$0xf]
    %v187 = vld [vmem:[#allocation7 + $0x34] sm:$0xf]
    %v188 = vld [vmem:[#allocation7 + $0x38] sm:$0xf]
    %v189 = vld [vmem:[#allocation7 + $0x3c] sm:$0xf]
    %v190 = vld [vmem:[%s4] sm:$0x1]
    %v192 = vlaneseq
    %v193 = vshrl.u32 %v192, 7
    %v194 = vsub.s32 0, %v193
    %v195 = vrot.slane %v190, %v194
    %v213 = vunpack.c.l.b16 %v174
    %v214 = vunpack.c.l.b16 %v175
    %v215 = vunpack.c.l.b16 %v176
    %v216 = vunpack.c.l.b16 %v177
    %v217 = vunpack.c.l.b16 %v178
    %v218 = vunpack.c.l.b16 %v179
    %v219 = vunpack.c.l.b16 %v180
    %v220 = vunpack.c.l.b16 %v181
    %v221 = vunpack.c.l.b16 %v182
    %v222 = vunpack.c.l.b16 %v183
    %v223 = vunpack.c.l.b16 %v184
    %v224 = vunpack.c.l.b16 %v185
    %v225 = vunpack.c.l.b16 %v186
    %v226 = vunpack.c.l.b16 %v187
    %v227 = vunpack.c.l.b16 %v188
    %v228 = vunpack.c.l.b16 %v189
    %v229 = vpack.c.b16 %v214, %v213
    %v230 = vpack.c.b16 %v216, %v215
    %v231 = vpack.c.b16 %v218, %v217
    %v232 = vpack.c.b16 %v220, %v219
    %v233 = vpack.c.b16 %v222, %v221
    %v234 = vpack.c.b16 %v224, %v223
    %v235 = vpack.c.b16 %v226, %v225
    %v236 = vpack.c.b16 %v228, %v227
    %245 = vmatprep.subr.bf16.mxu0 0
    %246 = vmatpush1.bf16.msra.mxu0 %v229
    %247 = vmatprep.subr.bf16.mxu0 0
    %248 = vmatpush1.bf16.msra.mxu0 %v230
    %249 = vmatprep.subr.bf16.mxu0 0
    %250 = vmatpush1.bf16.msra.mxu0 %v231
    %251 = vmatprep.subr.bf16.mxu0 0
    %252 = vmatpush1.bf16.msra.mxu0 %v232
    %253 = vmatprep.subr.bf16.mxu0 0
    %254 = vmatpush1.bf16.msra.mxu0 %v233
    %255 = vmatprep.subr.bf16.mxu0 0
    %256 = vmatpush1.bf16.msra.mxu0 %v234
    %257 = vmatprep.subr.bf16.mxu0 0
    %258 = vmatpush1.bf16.msra.mxu0 %v235
    %259 = vmatprep.subr.bf16.mxu0 0
    %260 = vmatpush1.bf16.msra.mxu0 %v236
    %261 = vmatprep.subr.bf16.mxu0 0
    %262 = vmatpush1.bf16.msra.mxu0 0
    %263 = vmatprep.subr.bf16.mxu0 0
    %264 = vmatpush1.bf16.msra.mxu0 0
    %265 = vmatprep.subr.bf16.mxu0 0
    %266 = vmatpush1.bf16.msra.mxu0 0
    %267 = vmatprep.subr.bf16.mxu0 0
    %268 = vmatpush1.bf16.msra.mxu0 0
    %269 = vmatprep.subr.bf16.mxu0 0
    %270 = vmatpush1.bf16.msra.mxu0 0
    %271 = vmatprep.subr.bf16.mxu0 0
    %272 = vmatpush1.bf16.msra.mxu0 0
    %273 = vmatprep.subr.bf16.mxu0 0
    %274 = vmatpush1.bf16.msra.mxu0 0
    %275 = vmatprep.subr.bf16.mxu0 0
    %276 = vmatpush1.bf16.msra.mxu0 0
    %277 = vmatprep.mubr.bf16.mxu0 0
    %278 = vmatmul.mubr.bf16.gmra.mrb[0].mxu0 %v172
    %v279 = vpop.f32.mrb[0].mxu0
    %v280 = vadd.f32 %v195, %v279
    %v281 = vpop.f32.mrb[0].mxu0
    %v282 = vpop.f32.mrb[0].mxu0
    %v283 = vadd.f32 %v195, %v282
    %v284 = vpop.f32.mrb[0].mxu0
    %285 = vmatprep.mubr.bf16.mxu0 0
    %286 = vmatmul.mubr.bf16.gmra.mrb[0].mxu0 %v173
    %v287 = vpop.f32.mrb[0].mxu0
    %v288 = vadd.f32 %v195, %v287
    %v289 = vpop.f32.mrb[0].mxu0
    %v290 = vpop.f32.mrb[0].mxu0
    %v291 = vadd.f32 %v195, %v290
    %v292 = vpop.f32.mrb[0].mxu0
    %293 = vdwg.mxu0
    %v294 = vmax.f32 %v280, 0.0
    %v295 = vmax.f32 %v283, 0.0
    %v296 = vmax.f32 %v288, 0.0
    %v297 = vmax.f32 %v291, 0.0
    %v298 = vpack.c.bf16 %v295, %v294
    %v299 = vpack.c.bf16 %v297, %v296
    %v300 = vld [vmem:[#allocation8] sm:$0xf]
    %v301 = vld [vmem:[#allocation8 + $0x4] sm:$0xf]
    %v302 = vld [vmem:[#allocation8 + $0x8] sm:$0xf]
    %v303 = vld [vmem:[#allocation8 + $0xc] sm:$0xf]
    %v304 = vld [vmem:[#allocation8 + $0x10] sm:$0xf]
    %v305 = vld [vmem:[#allocation8 + $0x14] sm:$0xf]
    %v306 = vld [vmem:[#allocation8 + $0x18] sm:$0xf]
    %v307 = vld [vmem:[#allocation8 + $0x1c] sm:$0xf]
    %v308 = vld [vmem:[#allocation8 + $0x20] sm:$0xf]
    %v309 = vld [vmem:[#allocation8 + $0x24] sm:$0xf]
    %v310 = vld [vmem:[#allocation8 + $0x28] sm:$0xf]
    %v311 = vld [vmem:[#allocation8 + $0x2c] sm:$0xf]
    %v312 = vld [vmem:[#allocation8 + $0x30] sm:$0xf]
    %v313 = vld [vmem:[#allocation8 + $0x34] sm:$0xf]
    %v314 = vld [vmem:[#allocation8 + $0x38] sm:$0xf]
    %v315 = vld [vmem:[#allocation8 + $0x3c] sm:$0xf]
    %v316 = vld [vmem:[%s6] sm:$0x1]
    %v318 = vlaneseq
    %v319 = vshrl.u32 %v318, 7
    %v320 = vsub.s32 0, %v319
    %v321 = vrot.slane %v316, %v320
    %v339 = vunpack.c.l.b16 %v300
    %v340 = vunpack.c.l.b16 %v301
    %v341 = vunpack.c.l.b16 %v302
    %v342 = vunpack.c.l.b16 %v303
    %v343 = vunpack.c.l.b16 %v304
    %v344 = vunpack.c.l.b16 %v305
    %v345 = vunpack.c.l.b16 %v306
    %v346 = vunpack.c.l.b16 %v307
    %v347 = vunpack.c.l.b16 %v308
    %v348 = vunpack.c.l.b16 %v309
    %v349 = vunpack.c.l.b16 %v310
    %v350 = vunpack.c.l.b16 %v311
    %v351 = vunpack.c.l.b16 %v312
    %v352 = vunpack.c.l.b16 %v313
    %v353 = vunpack.c.l.b16 %v314
    %v354 = vunpack.c.l.b16 %v315
    %v355 = vpack.c.b16 %v340, %v339
    %v356 = vpack.c.b16 %v342, %v341
    %v357 = vpack.c.b16 %v344, %v343
    %v358 = vpack.c.b16 %v346, %v345
    %v359 = vpack.c.b16 %v348, %v347
    %v360 = vpack.c.b16 %v350, %v349
    %v361 = vpack.c.b16 %v352, %v351
    %v362 = vpack.c.b16 %v354, %v353
    %371 = vmatprep.subr.bf16.mxu0 0
    %372 = vmatpush1.bf16.msra.mxu0 %v355
    %373 = vmatprep.subr.bf16.mxu0 0
    %374 = vmatpush1.bf16.msra.mxu0 %v356
    %375 = vmatprep.subr.bf16.mxu0 0
    %376 = vmatpush1.bf16.msra.mxu0 %v357
    %377 = vmatprep.subr.bf16.mxu0 0
    %378 = vmatpush1.bf16.msra.mxu0 %v358
    %379 = vmatprep.subr.bf16.mxu0 0
    %380 = vmatpush1.bf16.msra.mxu0 %v359
    %381 = vmatprep.subr.bf16.mxu0 0
    %382 = vmatpush1.bf16.msra.mxu0 %v360
    %383 = vmatprep.subr.bf16.mxu0 0
    %384 = vmatpush1.bf16.msra.mxu0 %v361
    %385 = vmatprep.subr.bf16.mxu0 0
    %386 = vmatpush1.bf16.msra.mxu0 %v362
    %387 = vmatprep.subr.bf16.mxu0 0
    %388 = vmatpush1.bf16.msra.mxu0 0
    %389 = vmatprep.subr.bf16.mxu0 0
    %390 = vmatpush1.bf16.msra.mxu0 0
    %391 = vmatprep.subr.bf16.mxu0 0
    %392 = vmatpush1.bf16.msra.mxu0 0
    %393 = vmatprep.subr.bf16.mxu0 0
    %394 = vmatpush1.bf16.msra.mxu0 0
    %395 = vmatprep.subr.bf16.mxu0 0
    %396 = vmatpush1.bf16.msra.mxu0 0
    %397 = vmatprep.subr.bf16.mxu0 0
    %398 = vmatpush1.bf16.msra.mxu0 0
    %399 = vmatprep.subr.bf16.mxu0 0
    %400 = vmatpush1.bf16.msra.mxu0 0
    %401 = vmatprep.subr.bf16.mxu0 0
    %402 = vmatpush1.bf16.msra.mxu0 0
    %403 = vmatprep.mubr.bf16.mxu0 0
    %404 = vmatmul.mubr.bf16.gmra.mrb[0].mxu0 %v298
    %v405 = vpop.f32.mrb[0].mxu0
    %v406 = vadd.f32 %v321, %v405
    %v407 = vpop.f32.mrb[0].mxu0
    %v408 = vpop.f32.mrb[0].mxu0
    %v409 = vadd.f32 %v321, %v408
    %v410 = vpop.f32.mrb[0].mxu0
    %411 = vmatprep.mubr.bf16.mxu0 0
    %412 = vmatmul.mubr.bf16.gmra.mrb[0].mxu0 %v299
    %v413 = vpop.f32.mrb[0].mxu0
    %v414 = vadd.f32 %v321, %v413
    %v415 = vpop.f32.mrb[0].mxu0
    %v416 = vpop.f32.mrb[0].mxu0
    %v417 = vadd.f32 %v321, %v416
    %v418 = vpop.f32.mrb[0].mxu0
    %419 = vdwg.mxu0
    %420 = vst [vmem:[#allocation10] sm:$0xff] %v406
    %421 = vst [vmem:[#allocation10 + $0x8] sm:$0xff] %v409
    %422 = vst [vmem:[#allocation10 + $0x10] sm:$0xff] %v414
    %423 = vst [vmem:[#allocation10 + $0x18] sm:$0xff] %v417
    // Predicated region
    $region46: #{tpu_custom_call.1} parent=1 // pred_check
      _
    $region47: #{tpu_custom_call.1} parent=1 // pred_check_branch
      %425 = sbr.rel (0) target = $region49
    $region48: #{tpu_custom_call.1} parent=1 // pred_region
      %s427 = ssub.s32 512, 384
      %428 = vsyncadd [#allocation4], %s427
      %s429 = sshll.u32 [#allocation10], 4
      %s430 = int_to_ptr.vmem [resolvable:$true] %s429
      %435 = dma.vmem_to_hbm [thread:$0]  %s430, 384, %s7, [#allocation4], 128, 128, 8
    $region49: #{tpu_custom_call.1} parent=1 // pred_fallthru
      _
    // Predicated region
    $region50: #{tpu_custom_call.1} parent=1 // pred_check
      _
    $region51: #{tpu_custom_call.1} parent=1 // pred_check_branch
      %437 = sbr.rel (0) target = $region53
    $region52: #{tpu_custom_call.1} parent=1 // pred_region
      %438 = dma.done [#allocation4], 512
    $region53: #{tpu_custom_call.1} parent=1 // pred_fallthru
      _
    %439 = vsyncpa [#allocation3], 1
    %440 = vsyncpa [#allocation6], 1
    %441 = vsyncpa [#allocation9], 1
    %442 = vsyncpa [#allocation4], 1

</llo_original>
